<compile_context>
chip_gen: v7x
topology: tpu7x:2x2x1
jax: 0.10.0
libtpu: 0.0.40
codegen_flags: <defaults>
</compile_context>

<pallas_src>
import jax
import jax.numpy as jnp
from jax.experimental import pallas as pl
from jax.experimental.pallas import tpu as pltpu


def _h_swish_kernel(x_ref, o_ref):
    x = x_ref[...]
    # Compute in f32 (v5e has no bf16 VPU path); no-op cast for f32 inputs.
    xf = x.astype(jnp.float32)
    # h_sigmoid(x) = relu6(x + 3) / 6 ; h_swish(x) = x * h_sigmoid(x)
    y = xf * (jnp.clip(xf + 3.0, 0.0, 6.0) / 6.0)
    o_ref[...] = y.astype(o_ref.dtype)


# ~2 MiB per block -> in + out, double-buffered, ~8 MiB VMEM: fits the scoped
# default on every generation with headroom and sits on the flat part of the
# measured HBM-roofline curve for elementwise kernels.
_TARGET_BLOCK_BYTES = 2 * 1024 * 1024


def _choose_lane(n: int) -> tuple[int, int]:
    """Pick a lane width (multiple of 128) that divides n; else pad a small tail."""
    for lane in (2048, 1024, 512, 256, 128):
        if n % lane == 0:
            return lane, 0
    lane = 128 if n < (1 << 22) else 1024
    return lane, (-n) % lane


def _largest_dividing_block(rows: int, max_rows: int):
    """Largest multiple of 8 that divides `rows` and is <= max_rows (or None)."""
    start = (min(max_rows, rows) // 8) * 8
    for b in range(start, 7, -8):
        if rows % b == 0:
            return b
    return None


def h_swish(x: jax.Array) -> jax.Array:
    """Elementwise h_swish on an arbitrary-shape tensor via a tiled Pallas kernel."""
    orig_shape = x.shape
    orig_dtype = x.dtype
    n = x.size
    if n == 0:
        return x

    itemsize = jnp.dtype(orig_dtype).itemsize

    # Flatten fully and reshape into a lane-dense slab [rows, lane].
    lane, pad = _choose_lane(n)
    rows = (n + pad) // lane

    # Biggest row-block that keeps the block around _TARGET_BLOCK_BYTES.
    max_rows = max(8, (_TARGET_BLOCK_BYTES // (lane * itemsize)) // 8 * 8)

    if rows <= max_rows:
        block_r = rows            # single full-extent block along rows
    else:
        block_r = _largest_dividing_block(rows, max_rows)
        if block_r is None:
            # No nice divisor: pad up to a multiple of max_rows (<= one block).
            block_r = max_rows
            extra = (-rows) % block_r
            pad += extra * lane
            rows += extra
    grid_r = rows // block_r      # blocks always divide exactly -> no partial blocks

    xf = x.reshape(-1)
    if pad:
        xf = jnp.pad(xf, (0, pad))
    x2 = xf.reshape(rows, lane)

    out = pl.pallas_call(
        _h_swish_kernel,
        out_shape=jax.ShapeDtypeStruct((rows, lane), orig_dtype),
        grid=(grid_r,),
        in_specs=[pl.BlockSpec((block_r, lane), lambda i: (i, 0))],
        out_specs=pl.BlockSpec((block_r, lane), lambda i: (i, 0)),
        compiler_params=pltpu.CompilerParams(
            dimension_semantics=("parallel",),
        ),
    )(x2)

    out = out.reshape(-1)
    if pad:
        out = out[:n]
    return out.reshape(orig_shape)


if __name__ == "__main__":
    key = jax.random.PRNGKey(0)
    # Small NCHW input consistent with typical conv-activation usage.
    x = jax.random.normal(key, (2, 4, 16, 16), dtype=jnp.float32) * 4.0
    y = jax.block_until_ready(h_swish(x))
    ref = x * (jnp.clip(x + 3.0, 0.0, 6.0) / 6.0)
    assert y.shape == x.shape and y.dtype == x.dtype
    assert jnp.max(jnp.abs(y - ref)) < 1e-5

    # Moderate shape: exercises a multi-step grid (rows=384 -> block_r=192, grid=2).
    x2 = jax.random.normal(jax.random.PRNGKey(1), (8, 32, 32, 96), dtype=jnp.float32) * 4.0
    y2 = jax.block_until_ready(h_swish(x2))
    ref2 = x2 * (jnp.clip(x2 + 3.0, 0.0, 6.0) / 6.0)
    assert jnp.max(jnp.abs(y2 - ref2)) < 1e-5

    # bf16 input: kernel upcasts to f32 internally and stores bf16.
    xb = x.astype(jnp.bfloat16)
    yb = jax.block_until_ready(h_swish(xb))
    xbf = xb.astype(jnp.float32)
    refb = (xbf * (jnp.clip(xbf + 3.0, 0.0, 6.0) / 6.0)).astype(jnp.bfloat16)
    assert yb.dtype == jnp.bfloat16
    assert jnp.max(jnp.abs(yb.astype(jnp.float32) - refb.astype(jnp.float32))) < 2e-2

    # Awkward element count: exercises the tail-padding path.
    x3 = jax.random.normal(jax.random.PRNGKey(2), (3, 5, 7, 11), dtype=jnp.float32) * 4.0
    y3 = jax.block_until_ready(h_swish(x3))
    ref3 = x3 * (jnp.clip(x3 + 3.0, 0.0, 6.0) / 6.0)
    assert jnp.max(jnp.abs(y3 - ref3)) < 1e-5

    print("KERNEL_OK")
</pallas_src>

<mosaic_0001>
module attributes {stable_mosaic.version = 11 : i64} {
  func.func @_h_swish_kernel(%arg0: i32, %arg1: memref<1x2048xf32, #tpu.memory_space<vmem>>, %arg2: memref<1x2048xf32, #tpu.memory_space<vmem>>) attributes {dimension_semantics = [#tpu.dimension_semantics<parallel>], iteration_bounds = array<i64: 1>, scalar_prefetch = 0 : i64, scratch_operands = 0 : i64, tpu.core_type = #tpu.core_type<tc>, window_params = [{transform_indices = @transform_0, window_bounds = array<i64: 1, 2048>}, {transform_indices = @transform_1, window_bounds = array<i64: 1, 2048>}]} {
    %c0 = arith.constant 0 : index
    %c0_0 = arith.constant 0 : index
    %0 = vector.load %arg1[%c0, %c0_0] : memref<1x2048xf32, #tpu.memory_space<vmem>>, vector<1x2048xf32>
    %cst = arith.constant 3.000000e+00 : f32
    %1 = vector.broadcast %cst : f32 to vector<1x2048xf32>
    %2 = arith.addf %0, %1 : vector<1x2048xf32>
    %cst_1 = arith.constant 0.000000e+00 : f32
    %cst_2 = arith.constant 6.000000e+00 : f32
    %3 = vector.broadcast %cst_1 : f32 to vector<1x2048xf32>
    %4 = arith.maximumf %3, %2 : vector<1x2048xf32>
    %5 = vector.broadcast %cst_2 : f32 to vector<1x2048xf32>
    %6 = arith.minimumf %5, %4 : vector<1x2048xf32>
    %cst_3 = arith.constant 6.000000e+00 : f32
    %7 = vector.broadcast %cst_3 : f32 to vector<1x2048xf32>
    %8 = arith.divf %6, %7 : vector<1x2048xf32>
    %9 = arith.mulf %0, %8 : vector<1x2048xf32>
    %c0_4 = arith.constant 0 : index
    %c0_5 = arith.constant 0 : index
    %10 = vector.load %arg2[%c0_4, %c0_5] : memref<1x2048xf32, #tpu.memory_space<vmem>>, vector<1x2048xf32>
    tpu.vector_store %arg2[%c0_4, %c0_5], %9 {strides = array<i32>} : memref<1x2048xf32, #tpu.memory_space<vmem>>, vector<1x2048xf32>,
    return
  }
  func.func @transform_0(%arg0: i32) -> (i32, i32) {
    %c0_i32 = arith.constant 0 : i32
    %c0_i32_0 = arith.constant 0 : i32
    return %arg0, %c0_i32 : i32, i32
  }
  func.func @transform_1(%arg0: i32) -> (i32, i32) {
    %c0_i32 = arith.constant 0 : i32
    %c0_i32_0 = arith.constant 0 : i32
    return %arg0, %c0_i32 : i32, i32
  }
}

</mosaic_0001>

<llo_original>
// kernel: tpu_custom_call.1
$region0: #{tpu_custom_call.1}
  #allocation0 [shape = 'u32[]', space=smem, size = 0x4, offset = 0x4, fixed_abs, tag = 'smem constant byte address 0x4 - core index']
  #allocation1 [shape = 'u32[144,128]{1,0:T(1,128)}', space=vmem, size = 0x12000, scoped, tag = 'internal scratch']
  %s0 = inlined_call_operand.hbm [shape: f32[1,2048], index: 0, kind: input, shape index: {}]
  %s1 = inlined_call_operand.hbm [shape: f32[1,2048], index: 1, kind: output, shape index: {}]
  %s2 = sld [smem:[#allocation0]]
  $region18: #{tpu_custom_call.1} parent=0
    _
  %s4 = ssub.s32 1, %s2
  %s5 = scalar_select 0, %s4, %s2
  $region1: #{tpu_custom_call.1} parent=0
    #allocation2 [shape = 'u8[8192]{0}', space=vmem, size = 0x2000, scoped, tag = 'input window, operand 0, single buffered']
    #allocation3 [shape = 's32[1]{0}', space=sflag, size = 0x4, scoped, tag = 'scoped memory for tpu_custom_call.1']
    #allocation4 [shape = 's32[1]{0}', space=sflag, size = 0x4, scoped, tag = 'scoped memory for tpu_custom_call.1']
    #allocation5 [shape = 'u8[8192]{0}', space=vmem, size = 0x2000, scoped, tag = 'output window, operand 0, single buffered']
    %6 = vsyncpa [#allocation3], 0
    %7 = vsyncpa [#allocation4], 0
    // Predicated region
    $region2: #{tpu_custom_call.1} parent=1 // pred_check
      _
    $region3: #{tpu_custom_call.1} parent=1 // pred_check_branch
      %9 = sbr.rel (0) target = $region5
    $region4: #{tpu_custom_call.1} parent=1 // pred_region
      %s11 = ssub.s32 256, 256
      %12 = vsyncadd [#allocation3], %s11
      %s14 = sshll.u32 [#allocation2], 4
      %s15 = int_to_ptr.vmem [resolvable:$true] %s14
      %17 = dma.hbm_to_vmem [thread:$0]  %s0, 256, %s15, [#allocation3]
    $region5: #{tpu_custom_call.1} parent=1 // pred_fallthru
      _
    // Predicated region
    $region6: #{tpu_custom_call.1} parent=1 // pred_check
      _
    $region7: #{tpu_custom_call.1} parent=1 // pred_check_branch
      %19 = sbr.rel (0) target = $region9
    $region8: #{tpu_custom_call.1} parent=1 // pred_region
      %20 = dma.done [#allocation3], 256
    $region9: #{tpu_custom_call.1} parent=1 // pred_fallthru
      _
    %v21 = vld [vmem:[#allocation2] sm:$0xff]
    %v22 = vld [vmem:[#allocation2 + $0x8] sm:$0xff]
    %v23 = vadd.f32 %v21, 3.0
    %v24 = vadd.f32 %v22, 3.0
    %v25 = vmax.f32 %v23, 0.0
    %v26 = vmax.f32 %v24, 0.0
    %v27 = vmin.f32 %v25, 6.0
    %v28 = vmin.f32 %v26, 6.0
    %v29 = vrcp.pop 6.0
    %v30 = vmul.f32 %v27, %v29
    %v31 = vmul.f32 %v28, %v29
    %v32 = vmul.f32 %v21, %v30
    %v33 = vmul.f32 %v22, %v31
    %34 = vst [vmem:[#allocation5] sm:$0xff] %v32
    %35 = vst [vmem:[#allocation5 + $0x8] sm:$0xff] %v33
    // Predicated region
    $region10: #{tpu_custom_call.1} parent=1 // pred_check
      _
    $region11: #{tpu_custom_call.1} parent=1 // pred_check_branch
      %37 = sbr.rel (0) target = $region13
    $region12: #{tpu_custom_call.1} parent=1 // pred_region
      %s39 = ssub.s32 256, 256
      %40 = vsyncadd [#allocation4], %s39
      %s42 = sshll.u32 [#allocation5], 4
      %s43 = int_to_ptr.vmem [resolvable:$true] %s42
      %45 = dma.vmem_to_hbm [thread:$0]  %s43, 256, %s1, [#allocation4]
    $region13: #{tpu_custom_call.1} parent=1 // pred_fallthru
      _
    // Predicated region
    $region14: #{tpu_custom_call.1} parent=1 // pred_check
      _
    $region15: #{tpu_custom_call.1} parent=1 // pred_check_branch
      %47 = sbr.rel (0) target = $region17
    $region16: #{tpu_custom_call.1} parent=1 // pred_region
      %48 = dma.done [#allocation4], 256
    $region17: #{tpu_custom_call.1} parent=1 // pred_fallthru
      _
    %49 = vsyncpa [#allocation3], 1
    %50 = vsyncpa [#allocation4], 1

</llo_original>
